<compile_context>
chip_gen: v7x
topology: tpu7x:2x2x1
jax: 0.10.0
libtpu: 0.0.40
codegen_flags: <defaults>
</compile_context>

<pallas_src>
import functools

import jax
import jax.numpy as jnp
from jax import lax
from jax.experimental import pallas as pl
from jax.experimental.pallas import tpu as pltpu

DROPOUT_P = 0.1


def _pos_dropout_kernel(seed_ref, x_ref, pos_ref, o_ref, *,
                        p, training, tile_b, tile_f, total_f):
    # x_ref:   (tB, tF)  flattened (seq*embd) tile of one batch-row block
    # pos_ref: (1,  tF)  matching tile of the flattened positional table
    # o_ref:   (tB, tF)
    y = x_ref[...] + pos_ref[...]          # broadcast over the batch rows

    if training and p > 0.0:
        bi = pl.program_id(0)
        fi = pl.program_id(1)
        shape = y.shape
        rows = (lax.broadcasted_iota(jnp.int32, shape, 0)
                + bi * tile_b).astype(jnp.uint32)
        cols = (lax.broadcasted_iota(jnp.int32, shape, 1)
                + fi * tile_f).astype(jnp.uint32)
        # Global element counter (wraps mod 2^32 for huge arrays -- fine,
        # it only feeds the hash).
        idx = rows * jnp.uint32(total_f) + cols
        seed = seed_ref[0].astype(jnp.uint32)
        h = idx * jnp.uint32(0x9E3779B9) + seed
        # Integer avalanche (murmur/xxhash-style finalizer) -- pure VPU ops.
        h = (h ^ (h >> jnp.uint32(16))) * jnp.uint32(0x7FEB352D)
        h = (h ^ (h >> jnp.uint32(15))) * jnp.uint32(0x846CA68B)
        h = h ^ (h >> jnp.uint32(16))
        # Keep with probability (1 - p): integer threshold, no float uniform.
        thr = jnp.uint32(min(int(round(p * (1 << 32))), (1 << 32) - 1))
        keep = h >= thr
        scale = jnp.asarray(1.0 / (1.0 - p), dtype=y.dtype)
        y = jnp.where(keep, y * scale, jnp.zeros_like(y))

    o_ref[...] = y


def _pick_flat_tile(F, max_elems=64 * 1024):
    """Largest multiple-of-128 divisor of F that is <= max_elems.

    Falls back to the full extent F (always legal as a block dim) when F is
    small or not a multiple of 128.
    """
    if F % 128 != 0 or F <= max_elems:
        return F
    best = 128
    t = 128
    while t <= max_elems:
        if F % t == 0:
            best = t
        t += 128
    return best


def learned_positional_encoding(x, pos_table, seed, *, p=DROPOUT_P, training=True):
    """x: (B, T, D); pos_table: (max_seq_len, D); seed: python/int32 scalar."""
    B, T, D = x.shape
    assert pos_table.shape[0] >= T and pos_table.shape[1] == D

    F = T * D
    x2 = x.reshape(B, F)                              # lane-dense flatten
    pos2 = pos_table[:T].reshape(1, F).astype(x.dtype)

    tB = B if B <= 8 else 8                           # 2nd-to-last dim: full or /8
    tF = _pick_flat_tile(F)                           # last dim: x128, <= 2 MiB/blk

    kernel = functools.partial(
        _pos_dropout_kernel, p=p, training=training,
        tile_b=tB, tile_f=tF, total_f=F)

    seed_arr = jnp.asarray([seed], dtype=jnp.int32)

    out2 = pl.pallas_call(
        kernel,
        out_shape=jax.ShapeDtypeStruct((B, F), x.dtype),
        grid_spec=pltpu.PrefetchScalarGridSpec(
            num_scalar_prefetch=1,                    # seed lands in SMEM
            grid=(pl.cdiv(B, tB), F // tF),
            in_specs=[
                pl.BlockSpec((tB, tF), lambda bi, fi, seed: (bi, fi)),
                pl.BlockSpec((1, tF), lambda bi, fi, seed: (0, fi)),
            ],
            out_specs=pl.BlockSpec((tB, tF), lambda bi, fi, seed: (bi, fi)),
        ),
        compiler_params=pltpu.CompilerParams(
            dimension_semantics=("parallel", "parallel"),
        ),
    )(seed_arr, x2, pos2)

    return out2.reshape(B, T, D)


if __name__ == "__main__":
    # Small shapes consistent with the module: batch=2, seq=8, hidden=32.
    B, T, D = 2, 8, 32
    max_seq_len = 16

    key = jax.random.PRNGKey(0)
    kx, ke = jax.random.split(key)
    x = jax.random.normal(kx, (B, T, D), dtype=jnp.float32)
    # nn.Embedding default init: N(0, 1)
    pos_table = jax.random.normal(ke, (max_seq_len, D), dtype=jnp.float32)

    ref = x + pos_table[:T][None]

    # Eval path (dropout disabled) must match the plain broadcast add exactly.
    out_eval = learned_positional_encoding(x, pos_table, seed=0, training=False)
    out_eval = jax.block_until_ready(out_eval)
    assert jnp.allclose(out_eval, ref, atol=1e-6)

    # Training path: surviving elements equal (x + pos) / (1 - p); dropped are 0.
    out = learned_positional_encoding(x, pos_table, seed=1234, training=True)
    out = jax.block_until_ready(out)
    kept = out != 0.0
    assert jnp.allclose(jnp.where(kept, out * (1.0 - DROPOUT_P), 0.0),
                        jnp.where(kept, ref, 0.0), atol=1e-5)
    # Dropout rate should be roughly p (loose bound for a tiny tensor).
    drop_frac = 1.0 - kept.mean()
    assert 0.0 <= float(drop_frac) <= 0.35

    print("KERNEL_OK")
</pallas_src>

<mosaic_0001>
module attributes {stable_mosaic.version = 11 : i64} {
  func.func @_pos_dropout_kernel(%arg0: i32, %arg1: i32, %arg2: memref<1xi32, #tpu.memory_space<smem>>, %arg3: memref<2x256xf32, #tpu.memory_space<vmem>>, %arg4: memref<1x256xf32, #tpu.memory_space<vmem>>, %arg5: memref<2x256xf32, #tpu.memory_space<vmem>>) attributes {dimension_semantics = [#tpu.dimension_semantics<parallel>, #tpu.dimension_semantics<parallel>], iteration_bounds = array<i64: 1, 1>, scalar_prefetch = 1 : i64, scratch_operands = 0 : i64, tpu.core_type = #tpu.core_type<tc>, window_params = [{transform_indices = @transform_0, window_bounds = array<i64: 2, 256>}, {transform_indices = @transform_1, window_bounds = array<i64: 1, 256>}, {transform_indices = @transform_2, window_bounds = array<i64: 2, 256>}]} {
    %c0 = arith.constant 0 : index
    %c0_0 = arith.constant 0 : index
    %0 = vector.load %arg3[%c0, %c0_0] : memref<2x256xf32, #tpu.memory_space<vmem>>, vector<2x256xf32>
    %c0_1 = arith.constant 0 : index
    %c0_2 = arith.constant 0 : index
    %1 = vector.load %arg4[%c0_1, %c0_2] : memref<1x256xf32, #tpu.memory_space<vmem>>, vector<1x256xf32>
    %2 = vector.broadcast %1 : vector<1x256xf32> to vector<2x256xf32>
    %3 = arith.addf %0, %2 : vector<2x256xf32>
    %c0_3 = arith.constant 0 : index
    %c0_4 = arith.constant 0 : index
    %4 = vector.load %arg5[%c0_3, %c0_4] : memref<2x256xf32, #tpu.memory_space<vmem>>, vector<2x256xf32>
    tpu.vector_store %arg5[%c0_3, %c0_4], %3 {strides = array<i32>} : memref<2x256xf32, #tpu.memory_space<vmem>>, vector<2x256xf32>,
    return
  }
  func.func @transform_0(%arg0: i32, %arg1: i32, %arg2: memref<1xi32, #tpu.memory_space<smem>>) -> (i32, i32) {
    %c0_i32 = arith.constant 0 : i32
    return %arg0, %arg1 : i32, i32
  }
  func.func @transform_1(%arg0: i32, %arg1: i32, %arg2: memref<1xi32, #tpu.memory_space<smem>>) -> (i32, i32) {
    %c0_i32 = arith.constant 0 : i32
    %c0_i32_0 = arith.constant 0 : i32
    return %c0_i32, %arg1 : i32, i32
  }
  func.func @transform_2(%arg0: i32, %arg1: i32, %arg2: memref<1xi32, #tpu.memory_space<smem>>) -> (i32, i32) {
    %c0_i32 = arith.constant 0 : i32
    return %arg0, %arg1 : i32, i32
  }
}

</mosaic_0001>

<llo_original>
// kernel: tpu_custom_call.1
$region0: #{tpu_custom_call.1}
  #allocation0 [shape = 'u32[]', space=smem, size = 0x4, offset = 0x4, fixed_abs, tag = 'smem constant byte address 0x4 - core index']
  #allocation1 [shape = 'u32[144,128]{1,0:T(1,128)}', space=vmem, size = 0x12000, scoped, tag = 'internal scratch']
  #allocation2 [shape = 's32[1]{0}', space=sflag, size = 0x4, scoped, tag = 'scoped memory for tpu_custom_call.1']
  #allocation3 [shape = 's32[1]{0:T(128)S(6)}', space=smem, size = 0x200, scoped, tag = 'prefetched SMEM operand 0']
  %s0 = inlined_call_operand.<no memory space> [shape: s32[1], index: 0, kind: input, shape index: {}]
  %s1 = inlined_call_operand.hbm [shape: f32[2,256], index: 1, kind: input, shape index: {}]
  %s2 = inlined_call_operand.vmem [shape: f32[1,256], index: 2, kind: input, shape index: {}]
  %s3 = inlined_call_operand.hbm [shape: f32[2,256], index: 3, kind: output, shape index: {}]
  %s4 = sld [smem:[#allocation0]]
  $region22: #{tpu_custom_call.1} parent=0
    _
  %s6 = ssub.s32 1, %s4
  %s7 = scalar_select 0, %s6, %s4
  %8 = sst [smem:[#allocation3]] %s0
  $region1: #{tpu_custom_call.1} parent=0
    #allocation4 [shape = 'u8[2048]{0}', space=vmem, size = 0x800, scoped, tag = 'input window, operand 1, single buffered']
    #allocation5 [shape = 's32[1]{0}', space=sflag, size = 0x4, scoped, tag = 'scoped memory for tpu_custom_call.1']
    #allocation6 [shape = 's32[1]{0}', space=sflag, size = 0x4, scoped, tag = 'scoped memory for tpu_custom_call.1']
    #allocation7 [shape = 'u8[2048]{0}', space=vmem, size = 0x800, scoped, tag = 'output window, operand 0, single buffered']
    %9 = vsyncpa [#allocation5], 0
    %10 = vsyncpa [#allocation6], 0
    // Predicated region
    $region2: #{tpu_custom_call.1} parent=1 // pred_check
      _
    $region3: #{tpu_custom_call.1} parent=1 // pred_check_branch
      %12 = sbr.rel (0) target = $region5
    $region4: #{tpu_custom_call.1} parent=1 // pred_region
      %s14 = ssub.s32 64, 64
      %15 = vsyncadd [#allocation5], %s14
      %s17 = sshll.u32 [#allocation4], 4
      %s18 = int_to_ptr.vmem [resolvable:$true] %s17
      %20 = dma.hbm_to_vmem [thread:$0]  %s1, 64, %s18, [#allocation5]
    $region5: #{tpu_custom_call.1} parent=1 // pred_fallthru
      _
    // Predicated region
    $region6: #{tpu_custom_call.1} parent=1 // pred_check
      _
    $region7: #{tpu_custom_call.1} parent=1 // pred_check_branch
      %22 = sbr.rel (0) target = $region9
    $region8: #{tpu_custom_call.1} parent=1 // pred_region
      _
    $region9: #{tpu_custom_call.1} parent=1 // pred_fallthru
      _
    // Predicated region
    $region10: #{tpu_custom_call.1} parent=1 // pred_check
      _
    $region11: #{tpu_custom_call.1} parent=1 // pred_check_branch
      %24 = sbr.rel (0) target = $region13
    $region12: #{tpu_custom_call.1} parent=1 // pred_region
      %25 = dma.done [#allocation5], 64
    $region13: #{tpu_custom_call.1} parent=1 // pred_fallthru
      _
    %v26 = vld [vmem:[#allocation4] sm:$0xf]
    %v27 = vld [vmem:[%s2] sm:$0x3]
    %v29 = vlaneseq
    %v30 = vshrl.u32 %v29, 7
    %v31 = vsub.s32 0, %v30
    %v32 = vrot.slane %v27, %v31
    %v33 = vlaneseq
    %v34 = vshrl.u32 %v33, 7
    %v35 = vsub.s32 1, %v34
    %v36 = vrot.slane %v27, %v35
    %v37 = vcombine.low %v32, %v36
    %v39 = vunpack.c.l.s4 1983009808
    %v40 = vunpack.c.0.s8 %v39
    %v41 = vlaneseq
    %v42 = vshrl.u32 %v41, 7
    %v43 = vsub.s32 %v40, %v42
    %v44 = vrot.slane %v37, %v43
    %v46 = vadd.f32 %v26, %v44
    %47 = vst [vmem:[#allocation7] sm:$0xf] %v46
    // Predicated region
    $region14: #{tpu_custom_call.1} parent=1 // pred_check
      _
    $region15: #{tpu_custom_call.1} parent=1 // pred_check_branch
      %49 = sbr.rel (0) target = $region17
    $region16: #{tpu_custom_call.1} parent=1 // pred_region
      %s51 = ssub.s32 64, 64
      %52 = vsyncadd [#allocation6], %s51
      %s54 = sshll.u32 [#allocation7], 4
      %s55 = int_to_ptr.vmem [resolvable:$true] %s54
      %57 = dma.vmem_to_hbm [thread:$0]  %s55, 64, %s3, [#allocation6]
    $region17: #{tpu_custom_call.1} parent=1 // pred_fallthru
      _
    // Predicated region
    $region18: #{tpu_custom_call.1} parent=1 // pred_check
      _
    $region19: #{tpu_custom_call.1} parent=1 // pred_check_branch
      %59 = sbr.rel (0) target = $region21
    $region20: #{tpu_custom_call.1} parent=1 // pred_region
      %60 = dma.done [#allocation6], 64
    $region21: #{tpu_custom_call.1} parent=1 // pred_fallthru
      _
    %61 = vsyncpa [#allocation5], 1
    %62 = vsyncpa [#allocation6], 1

</llo_original>
